<compile_context>
chip_gen: v5e
topology: v5e:2x2
jax: 0.10.0
libtpu: 0.0.40
codegen_flags: <defaults>
</compile_context>

<pallas_src>
import functools
import math

import jax
import jax.numpy as jnp
from jax.experimental import pallas as pl
from jax.experimental.pallas import tpu as pltpu


# --------------------------------------------------------------------------
# helpers
# --------------------------------------------------------------------------
def _pick_tile(dim, target, align):
    """Largest tile <= target that divides `dim` and is `align`-granular.
    Falls back to the full dimension (always legal per the (8,128) rule)."""
    if dim <= target:
        return dim
    t = (target // align) * align
    while t >= align:
        if dim % t == 0:
            return t
        t -= align
    return dim


# --------------------------------------------------------------------------
# Kernel 1: tiled QKV projection  (x @ W + b)
# --------------------------------------------------------------------------
def _matmul_bias_kernel(x_ref, w_ref, b_ref, o_ref, acc_ref):
    @pl.when(pl.program_id(2) == 0)
    def _init():
        acc_ref[...] = jnp.zeros_like(acc_ref)

    acc_ref[...] += jnp.dot(x_ref[...], w_ref[...],
                            preferred_element_type=jnp.float32)

    @pl.when(pl.program_id(2) == pl.num_programs(2) - 1)
    def _finalize():
        o_ref[...] = (acc_ref[...] + b_ref[...].astype(jnp.float32)).astype(o_ref.dtype)


def qkv_proj_pallas(x, w, b, *, tm_target=512, tn_target=512, tk_target=512):
    """x: (B, S, H); w: (H, 3H); b: (3H,)  ->  (B, S, 3H)."""
    B, S, H = x.shape
    H3 = w.shape[1]
    M = B * S
    x2d = x.reshape(M, H)

    tm = _pick_tile(M, tm_target, 8)      # sublane axis of x / out
    tn = _pick_tile(H3, tn_target, 128)   # lane axis of w / out
    tk = _pick_tile(H, tk_target, 128)    # lane axis of x, sublane of w
    grid = (M // tm, H3 // tn, H // tk)

    itemsize = jnp.dtype(x.dtype).itemsize
    cost = pl.CostEstimate(
        flops=2 * M * H * H3,
        transcendentals=0,
        bytes_accessed=(M * H + H * H3 + M * H3 + H3) * itemsize,
    )

    out = pl.pallas_call(
        _matmul_bias_kernel,
        out_shape=jax.ShapeDtypeStruct((M, H3), x.dtype),
        grid=grid,
        in_specs=[
            pl.BlockSpec((tm, tk), lambda i, j, k: (i, k)),
            pl.BlockSpec((tk, tn), lambda i, j, k: (k, j)),
            pl.BlockSpec((1, tn), lambda i, j, k: (0, j)),
        ],
        out_specs=pl.BlockSpec((tm, tn), lambda i, j, k: (i, j)),
        scratch_shapes=[pltpu.VMEM((tm, tn), jnp.float32)],
        compiler_params=pltpu.CompilerParams(
            dimension_semantics=("parallel", "parallel", "arbitrary"),
            vmem_limit_bytes=48 * 1024 * 1024,   # safe on v5e/v6e (128 MiB) and v7x (64 MiB)
        ),
        cost_estimate=cost,
    )(x2d, w, b.reshape(1, H3))
    return out.reshape(B, S, H3)


# --------------------------------------------------------------------------
# Kernel 2: block-diagonal attention, per (batch, head, sequence block)
# --------------------------------------------------------------------------
def _block_attn_kernel(q_ref, k_ref, v_ref, o_ref, *, scale):
    # q: (1, tq, d)   k, v: (1, L, d)   o: (1, tq, d)
    q = q_ref[0].astype(jnp.float32) * scale      # fold 1/sqrt(d) into the (tq, d) tile
    k = k_ref[0].astype(jnp.float32)
    v = v_ref[0]
    s = jnp.dot(q, k.T, preferred_element_type=jnp.float32)      # (tq, L)
    s = s - jnp.max(s, axis=-1, keepdims=True)
    p = jnp.exp(s)
    denom = jnp.sum(p, axis=-1, keepdims=True)                   # (tq, 1)
    o = jnp.dot(p.astype(v.dtype), v, preferred_element_type=jnp.float32)
    # normalize the (tq, d) output (cheaper than normalizing the (tq, L) probs)
    o_ref[0] = (o * pl.reciprocal(denom)).astype(o_ref.dtype)


def block_diag_attention_pallas(q, k, v, *, head_dim, tq_target=512):
    """q, k, v: (G, L, d).  Softmax attention independently within each of the
    G = batch*heads*num_blocks slabs (queries tiled; K/V kept whole per slab,
    which bounds VMEM to a few MiB for realistic group sizes)."""
    G, L, d = q.shape
    tq = _pick_tile(L, tq_target, 8)
    grid = (G, L // tq)

    itemsize = jnp.dtype(q.dtype).itemsize
    cost = pl.CostEstimate(
        flops=4 * G * L * L * d,
        transcendentals=G * L * L,
        bytes_accessed=4 * G * L * d * itemsize,
    )

    q_spec = pl.BlockSpec((1, tq, d), lambda g, t: (g, t, 0))
    kv_spec = pl.BlockSpec((1, L, d), lambda g, t: (g, 0, 0))

    return pl.pallas_call(
        functools.partial(_block_attn_kernel, scale=1.0 / math.sqrt(head_dim)),
        out_shape=jax.ShapeDtypeStruct((G, L, d), q.dtype),
        grid=grid,
        in_specs=[q_spec, kv_spec, kv_spec],
        out_specs=q_spec,
        compiler_params=pltpu.CompilerParams(
            dimension_semantics=("parallel", "arbitrary"),
            vmem_limit_bytes=48 * 1024 * 1024,
        ),
        cost_estimate=cost,
    )(q, k, v)


# --------------------------------------------------------------------------
# Module (deterministic in-script init; forward-pass semantics == PyTorch spec)
# --------------------------------------------------------------------------
class ShiftedSparseAttentionPallas:
    def __init__(self, num_heads, hidden_size, group_size, key):
        self.num_heads = num_heads
        self.hidden_size = hidden_size
        self.head_dim = hidden_size // num_heads
        self.group_size = group_size
        k1, k2 = jax.random.split(key)
        bound = 1.0 / math.sqrt(hidden_size)
        self.w_qkv = jax.random.uniform(k1, (hidden_size, 3 * hidden_size),
                                        jnp.float32, -bound, bound)
        self.b_qkv = jax.random.uniform(k2, (3 * hidden_size,),
                                        jnp.float32, -bound, bound)

    def __call__(self, hidden_states, attention_mask=None):
        # TODO(synk): attention_mask path not implemented (reference is exercised with None).
        b, n, _ = hidden_states.shape
        h, d = self.num_heads, self.head_dim
        gs = self.group_size
        assert n % gs == 0 and gs % 2 == 0
        hg = gs // 2
        nb = n // hg                       # number of half-group sequence blocks

        qkv = qkv_proj_pallas(hidden_states, self.w_qkv, self.b_qkv)   # (b, n, 3hd)
        qkv = qkv.reshape(b, n, 3, h, d)
        # rearrange 'b n (three h d) -> three b h n d'
        q = jnp.transpose(qkv[:, :, 0], (0, 2, 1, 3))   # (b, h, n, d)
        k = jnp.transpose(qkv[:, :, 1], (0, 2, 1, 3))
        v = jnp.transpose(qkv[:, :, 2], (0, 2, 1, 3))

        # Roll(-gs//2 on heads) -> per-head attention -> roll(+gs//2 on heads)
        # cancels exactly, so the op is block-diagonal attention with block hg
        # along the sequence.  The (b, h, n, d) contiguous output equals the
        # reference's `out.transpose(1,2).contiguous()` layout, so the final
        # (b, n, h*d) view is a pure reshape — no output transpose needed.
        def to_blocks(t):                  # (b, h, n, d) -> (b*h*nb, hg, d), free reshape
            return t.reshape(b * h * nb, hg, d)

        out = block_diag_attention_pallas(to_blocks(q), to_blocks(k), to_blocks(v),
                                          head_dim=d)
        return out.reshape(b, n, h * d)


# --------------------------------------------------------------------------
# Pure-JAX reference (no Pallas), faithful to the PyTorch module incl. rolls
# --------------------------------------------------------------------------
def reference_forward(x, w, b, num_heads, group_size):
    bsz, n, H = x.shape
    d = H // num_heads
    qkv = x @ w + b
    qkv = qkv.reshape(bsz, n, 3, num_heads, d)
    q = jnp.transpose(qkv[:, :, 0], (0, 2, 1, 3))
    k = jnp.transpose(qkv[:, :, 1], (0, 2, 1, 3))
    v = jnp.transpose(qkv[:, :, 2], (0, 2, 1, 3))
    gs = group_size
    ng = n // gs
    hg = gs // 2
    regroup = lambda t: jnp.transpose(t.reshape(bsz, num_heads, ng, gs, d),
                                      (0, 2, 1, 3, 4))
    q, k, v = regroup(q), regroup(k), regroup(v)
    q1, q2 = q[:, :, :, :hg], q[:, :, :, hg:]
    k1, k2 = k[:, :, :, :hg], k[:, :, :, hg:]
    v1, v2 = v[:, :, :, :hg], v[:, :, :, hg:]
    q2 = jnp.roll(q2, -hg, axis=2)
    k2 = jnp.roll(k2, -hg, axis=2)
    v2 = jnp.roll(v2, -hg, axis=2)

    def attn(qq, kk, vv):
        s = jnp.einsum('bghqd,bghkd->bghqk', qq, kk) / math.sqrt(d)
        p = jax.nn.softmax(s, axis=-1)
        return jnp.einsum('bghqk,bghkd->bghqd', p, vv)

    o1 = attn(q1, k1, v1)
    o2 = attn(q2, k2, v2)
    o2 = jnp.roll(o2, hg, axis=2)
    out = jnp.concatenate([o1, o2], axis=3)
    out = jnp.transpose(out, (0, 2, 1, 3, 4)).reshape(bsz, n, H)
    return out


# --------------------------------------------------------------------------
if __name__ == "__main__":
    key = jax.random.PRNGKey(0)
    k_x, k_p = jax.random.split(key)

    batch, seq, hidden, heads, group_size = 2, 16, 64, 8, 8
    x = jax.random.normal(k_x, (batch, seq, hidden), jnp.float32)

    module = ShiftedSparseAttentionPallas(heads, hidden, group_size, k_p)
    out = jax.block_until_ready(module(x))

    ref = reference_forward(x, module.w_qkv, module.b_qkv, heads, group_size)
    assert out.shape == (batch, seq, hidden), out.shape
    assert bool(jnp.allclose(out, ref, atol=1e-4, rtol=1e-4)), "kernel/reference mismatch"

    print("KERNEL_OK")
</pallas_src>

<mosaic_0001>
module attributes {stable_mosaic.version = 11 : i64} {
  func.func @_matmul_bias_kernel(%arg0: i32, %arg1: i32, %arg2: i32, %arg3: memref<32x64xf32, #tpu.memory_space<vmem>>, %arg4: memref<64x192xf32, #tpu.memory_space<vmem>>, %arg5: memref<1x192xf32, #tpu.memory_space<vmem>>, %arg6: memref<32x192xf32, #tpu.memory_space<vmem>>, %arg7: memref<32x192xf32, #tpu.memory_space<vmem>>) attributes {dimension_semantics = [#tpu.dimension_semantics<parallel>, #tpu.dimension_semantics<parallel>, #tpu.dimension_semantics<arbitrary>], iteration_bounds = array<i64: 1, 1, 1>, scalar_prefetch = 0 : i64, scratch_operands = 1 : i64, tpu.core_type = #tpu.core_type<tc>, window_params = [{transform_indices = @transform_0, window_bounds = array<i64: 32, 64>}, {transform_indices = @transform_1, window_bounds = array<i64: 64, 192>}, {transform_indices = @transform_2, window_bounds = array<i64: 1, 192>}, {transform_indices = @transform_3, window_bounds = array<i64: 32, 192>}]} {
    %c0_i32 = arith.constant 0 : i32
    %0 = arith.cmpi eq, %arg2, %c0_i32 : i32
    %1 = arith.extui %0 : i1 to i32
    %c0_i32_0 = arith.constant 0 : i32
    %2 = arith.cmpi ne, %1, %c0_i32_0 : i32
    scf.if %2 {
      %cst_10 = arith.constant 0.000000e+00 : f32
      %12 = vector.broadcast %cst_10 : f32 to vector<32x192xf32>
      %c0_11 = arith.constant 0 : index
      %c0_12 = arith.constant 0 : index
      %13 = vector.load %arg7[%c0_11, %c0_12] : memref<32x192xf32, #tpu.memory_space<vmem>>, vector<32x192xf32>
      tpu.vector_store %arg7[%c0_11, %c0_12], %12 {strides = array<i32>} : memref<32x192xf32, #tpu.memory_space<vmem>>, vector<32x192xf32>,
    } else {
    }
    %c0 = arith.constant 0 : index
    %c0_1 = arith.constant 0 : index
    %3 = vector.load %arg7[%c0, %c0_1] : memref<32x192xf32, #tpu.memory_space<vmem>>, vector<32x192xf32>
    %c0_2 = arith.constant 0 : index
    %c0_3 = arith.constant 0 : index
    %4 = vector.load %arg3[%c0_2, %c0_3] : memref<32x64xf32, #tpu.memory_space<vmem>>, vector<32x64xf32>
    %c0_4 = arith.constant 0 : index
    %c0_5 = arith.constant 0 : index
    %5 = vector.load %arg4[%c0_4, %c0_5] : memref<64x192xf32, #tpu.memory_space<vmem>>, vector<64x192xf32>
    %cst = arith.constant dense<0.000000e+00> : vector<32x192xf32>
    %6 = tpu.matmul %4, %5, %cst {dimension_numbers = #tpu.dot_dimension_numbers<[1], [0], [0], [1], [0, 0, 1, 1], [], []>} : vector<32x64xf32>, vector<64x192xf32>, vector<32x192xf32> -> vector<32x192xf32>
    %7 = arith.addf %3, %6 : vector<32x192xf32>
    %c0_6 = arith.constant 0 : index
    %c0_7 = arith.constant 0 : index
    %8 = vector.load %arg7[%c0_6, %c0_7] : memref<32x192xf32, #tpu.memory_space<vmem>>, vector<32x192xf32>
    tpu.vector_store %arg7[%c0_6, %c0_7], %7 {strides = array<i32>} : memref<32x192xf32, #tpu.memory_space<vmem>>, vector<32x192xf32>,
    %c0_i32_8 = arith.constant 0 : i32
    %9 = arith.cmpi eq, %arg2, %c0_i32_8 : i32
    %10 = arith.extui %9 : i1 to i32
    %c0_i32_9 = arith.constant 0 : i32
    %11 = arith.cmpi ne, %10, %c0_i32_9 : i32
    scf.if %11 {
      %c0_10 = arith.constant 0 : index
      %c0_11 = arith.constant 0 : index
      %12 = vector.load %arg7[%c0_10, %c0_11] : memref<32x192xf32, #tpu.memory_space<vmem>>, vector<32x192xf32>
      %c0_12 = arith.constant 0 : index
      %c0_13 = arith.constant 0 : index
      %13 = vector.load %arg5[%c0_12, %c0_13] : memref<1x192xf32, #tpu.memory_space<vmem>>, vector<1x192xf32>
      %14 = vector.broadcast %13 : vector<1x192xf32> to vector<32x192xf32>
      %15 = arith.addf %12, %14 : vector<32x192xf32>
      %c0_14 = arith.constant 0 : index
      %c0_15 = arith.constant 0 : index
      %16 = vector.load %arg6[%c0_14, %c0_15] : memref<32x192xf32, #tpu.memory_space<vmem>>, vector<32x192xf32>
      tpu.vector_store %arg6[%c0_14, %c0_15], %15 {strides = array<i32>} : memref<32x192xf32, #tpu.memory_space<vmem>>, vector<32x192xf32>,
    } else {
    }
    return
  }
  func.func @transform_0(%arg0: i32, %arg1: i32, %arg2: i32) -> (i32, i32) {
    %c0_i32 = arith.constant 0 : i32
    return %arg0, %arg2 : i32, i32
  }
  func.func @transform_1(%arg0: i32, %arg1: i32, %arg2: i32) -> (i32, i32) {
    %c0_i32 = arith.constant 0 : i32
    return %arg2, %arg1 : i32, i32
  }
  func.func @transform_2(%arg0: i32, %arg1: i32, %arg2: i32) -> (i32, i32) {
    %c0_i32 = arith.constant 0 : i32
    %c0_i32_0 = arith.constant 0 : i32
    return %c0_i32, %arg1 : i32, i32
  }
  func.func @transform_3(%arg0: i32, %arg1: i32, %arg2: i32) -> (i32, i32) {
    %c0_i32 = arith.constant 0 : i32
    return %arg0, %arg1 : i32, i32
  }
}

</mosaic_0001>

<llo_original>
// kernel: tpu_custom_call.1
$region0: #{tpu_custom_call.1}
  #allocation0 [shape = 'u32[]', space=smem, size = 0x4, offset = 0x4, fixed_abs, tag = 'smem constant byte address 0x4 - core index']
  #allocation1 [shape = 'u32[72,128]{1,0:T(1,128)}', space=vmem, size = 0x9000, scoped, tag = 'internal scratch']
  #allocation2 [shape = 'f32[32,192]{1,0:T(8,128)}', space=vmem, size = 0x8000, scoped, tag = 'scratch operand']
  %s0 = inlined_call_operand.hbm [shape: f32[32,64], index: 0, kind: input, shape index: {}]
  %s1 = inlined_call_operand.hbm [shape: f32[64,192], index: 1, kind: input, shape index: {}]
  %s2 = inlined_call_operand.hbm [shape: f32[1,192], index: 2, kind: input, shape index: {}]
  %s3 = inlined_call_operand.hbm [shape: f32[32,192], index: 3, kind: output, shape index: {}]
  %s4 = sld [smem:[#allocation0]]
  $region42: #{tpu_custom_call.1} parent=0
    _
  %s6 = ssub.s32 1, %s4
  %s7 = scalar_select 0, %s6, %s4
  $region1: #{tpu_custom_call.1} parent=0
    #allocation3 [shape = 'u8[16384]{0}', space=vmem, size = 0x4000, scoped, tag = 'input window, operand 0, single buffered']
    #allocation4 [shape = 's32[1]{0}', space=sflag, size = 0x4, scoped, tag = 'scoped memory for tpu_custom_call.1']
    #allocation5 [shape = 's32[1]{0}', space=sflag, size = 0x4, scoped, tag = 'scoped memory for tpu_custom_call.1']
    #allocation6 [shape = 'u8[65536]{0}', space=vmem, size = 0x10000, scoped, tag = 'input window, operand 1, single buffered']
    #allocation7 [shape = 's32[1]{0}', space=sflag, size = 0x4, scoped, tag = 'scoped memory for tpu_custom_call.1']
    #allocation8 [shape = 'u8[1024]{0}', space=vmem, size = 0x400, scoped, tag = 'input window, operand 2, single buffered']
    #allocation9 [shape = 'u8[32768]{0}', space=vmem, size = 0x8000, scoped, tag = 'output window, operand 0, single buffered']
    %8 = vsyncpa [#allocation4], 0
    %9 = vsyncpa [#allocation7], 0
    %10 = vsyncpa [#allocation5], 0
    // Predicated region
    $region2: #{tpu_custom_call.1} parent=1 // pred_check
      _
    $region3: #{tpu_custom_call.1} parent=1 // pred_check_branch
      %12 = sbr.rel (0) target = $region5
    $region4: #{tpu_custom_call.1} parent=1 // pred_region
      %14 = vsyncadd [#allocation4], 0
      %s15 = sshll.u32 %s0, 4
      %s16 = int_to_ptr.hbm [resolvable:$true] %s15
      %s17 = sshll.u32 [#allocation3], 4
      %s18 = int_to_ptr.vmem [resolvable:$true] %s17
      %23 = dma.hbm_to_vmem [thread:$0]  %s16, 512, %s18, [#allocation4], 128, 128, 8
    $region5: #{tpu_custom_call.1} parent=1 // pred_fallthru
      _
    // Predicated region
    $region6: #{tpu_custom_call.1} parent=1 // pred_check
      _
    $region7: #{tpu_custom_call.1} parent=1 // pred_check_branch
      %25 = sbr.rel (0) target = $region9
    $region8: #{tpu_custom_call.1} parent=1 // pred_region
      %27 = vsyncadd [#allocation7], 0
      %s28 = sshll.u32 %s1, 4
      %s29 = int_to_ptr.hbm [resolvable:$true] %s28
      %s30 = sshll.u32 [#allocation6], 4
      %s31 = int_to_ptr.vmem [resolvable:$true] %s30
      %36 = dma.hbm_to_vmem [thread:$0]  %s29, 2048, %s31, [#allocation7], 256, 256, 16
    $region9: #{tpu_custom_call.1} parent=1 // pred_fallthru
      _
    // Predicated region
    $region10: #{tpu_custom_call.1} parent=1 // pred_check
      _
    $region11: #{tpu_custom_call.1} parent=1 // pred_check_branch
      %38 = sbr.rel (0) target = $region13
    $region12: #{tpu_custom_call.1} parent=1 // pred_region
      %40 = vsyncadd [#allocation7], 0
      %s42 = sshll.u32 %s2, 4
      %s43 = int_to_ptr.hbm [resolvable:$true] %s42
      %s44 = sshll.u32 [#allocation8], 4
      %s45 = int_to_ptr.vmem [resolvable:$true] %s44
      %47 = dma.hbm_to_vmem [thread:$0]  %s43, 32, %s45, [#allocation7]
    $region13: #{tpu_custom_call.1} parent=1 // pred_fallthru
      _
    // Predicated region
    $region14: #{tpu_custom_call.1} parent=1 // pred_check
      _
    $region15: #{tpu_custom_call.1} parent=1 // pred_check_branch
      %49 = sbr.rel (0) target = $region17
    $region16: #{tpu_custom_call.1} parent=1 // pred_region
      %51 = dma.done [#allocation4], 512
    $region17: #{tpu_custom_call.1} parent=1 // pred_fallthru
      _
    // Predicated region
    $region18: #{tpu_custom_call.1} parent=1 // pred_check
      _
    $region19: #{tpu_custom_call.1} parent=1 // pred_check_branch
      %53 = sbr.rel (0) target = $region21
    $region20: #{tpu_custom_call.1} parent=1 // pred_region
      %55 = dma.done [#allocation7], 2048
    $region21: #{tpu_custom_call.1} parent=1 // pred_fallthru
      _
    // Predicated region
    $region22: #{tpu_custom_call.1} parent=1 // pred_check
      _
    $region23: #{tpu_custom_call.1} parent=1 // pred_check_branch
      %57 = sbr.rel (0) target = $region25
    $region24: #{tpu_custom_call.1} parent=1 // pred_region
      %59 = dma.done [#allocation7], 32
    $region25: #{tpu_custom_call.1} parent=1 // pred_fallthru
      _
    %p60 = scmp.eq.s32.totalorder 0, 0
    // Predicated region
    $region26: #{tpu_custom_call.1} parent=1 // pred_check
      %p61 = pneg %p60
    $region27: #{tpu_custom_call.1} parent=1 // pred_check_branch
      %63 = sbr.rel (%p61) target = $region29
    $region28: #{tpu_custom_call.1} parent=1 // pred_region
      %64 = vst [vmem:[#allocation2] sm:$0xff] 0.0
      %vm65 = vcmask 523264
      %66 = vst.msk [vmem:[#allocation2 + $0x8] sm:$0xff] %vm65, 0.0
      %67 = vst [vmem:[#allocation2 + $0x10] sm:$0xff] 0.0
      %68 = vst.msk [vmem:[#allocation2 + $0x18] sm:$0xff] %vm65, 0.0
      %69 = vst [vmem:[#allocation2 + $0x20] sm:$0xff] 0.0
      %70 = vst.msk [vmem:[#allocation2 + $0x28] sm:$0xff] %vm65, 0.0
      %71 = vst [vmem:[#allocation2 + $0x30] sm:$0xff] 0.0
      %72 = vst.msk [vmem:[#allocation2 + $0x38] sm:$0xff] %vm65, 0.0
    $region29: #{tpu_custom_call.1} parent=1 // pred_fallthru
      _
    %v73 = vld [vmem:[#allocation2] sm:$0xff]
    %v74 = vld [vmem:[#allocation2 + $0x8] sm:$0xff]
    %v75 = vld [vmem:[#allocation2 + $0x10] sm:$0xff]
    %v76 = vld [vmem:[#allocation2 + $0x18] sm:$0xff]
    %v77 = vld [vmem:[#allocation2 + $0x20] sm:$0xff]
    %v78 = vld [vmem:[#allocation2 + $0x28] sm:$0xff]
    %v79 = vld [vmem:[#allocation2 + $0x30] sm:$0xff]
    %v80 = vld [vmem:[#allocation2 + $0x38] sm:$0xff]
    %v81 = vld [vmem:[#allocation3] sm:$0xff]
    %v82 = vld [vmem:[#allocation3 + $0x8] sm:$0xff]
    %v83 = vld [vmem:[#allocation3 + $0x10] sm:$0xff]
    %v84 = vld [vmem:[#allocation3 + $0x18] sm:$0xff]
    %v85 = vld [vmem:[#allocation6] sm:$0xff]
    %v86 = vld [vmem:[#allocation6 + $0x8] sm:$0xff]
    %v87 = vld [vmem:[#allocation6 + $0x10] sm:$0xff]
    %v88 = vld [vmem:[#allocation6 + $0x18] sm:$0xff]
    %v89 = vld [vmem:[#allocation6 + $0x20] sm:$0xff]
    %v90 = vld [vmem:[#allocation6 + $0x28] sm:$0xff]
    %v91 = vld [vmem:[#allocation6 + $0x30] sm:$0xff]
    %v92 = vld [vmem:[#allocation6 + $0x38] sm:$0xff]
    %v93 = vld [vmem:[#allocation6 + $0x40] sm:$0xff]
    %v94 = vld [vmem:[#allocation6 + $0x48] sm:$0xff]
    %v95 = vld [vmem:[#allocation6 + $0x50] sm:$0xff]
    %v96 = vld [vmem:[#allocation6 + $0x58] sm:$0xff]
    %v97 = vld [vmem:[#allocation6 + $0x60] sm:$0xff]
    %v98 = vld [vmem:[#allocation6 + $0x68] sm:$0xff]
    %v99 = vld [vmem:[#allocation6 + $0x70] sm:$0xff]
    %v100 = vld [vmem:[#allocation6 + $0x78] sm:$0xff]
    %vm101 = vcmask 523264
    %v103 = vsel %vm101, %v81, 0
    %v106 = vsel %vm101, %v82, 0
    %v109 = vsel %vm101, %v83, 0
    %v112 = vsel %vm101, %v84, 0
    %114 = vmatpush.msra.mxu0 0.0
    %115 = vmatpush.msra.mxu0 0.0
    %116 = vmatpush.msra.mxu0 0.0
    %117 = vmatpush.msra.mxu0 0.0
    %118 = vmatpush.msra.mxu0 0.0
    %119 = vmatpush.msra.mxu0 0.0
    %120 = vmatpush.msra.mxu0 0.0
    %121 = vmatpush.msra.mxu0 0.0
    %122 = vmatpush.msra.mxu0 %v99
    %123 = vmatpush.msra.mxu0 %v97
    %124 = vmatpush.msra.mxu0 %v95
    %125 = vmatpush.msra.mxu0 %v93
    %126 = vmatpush.msra.mxu0 %v91
    %127 = vmatpush.msra.mxu0 %v89
    %128 = vmatpush.msra.mxu0 %v87
    %129 = vmatpush.msra.mxu0 %v85
    %130 = vmatmul.f32.gmra.mxu0 %v103
    %v131 = vpop.f32.mrf.mxu0
    %v132 = vadd.f32 0.0, %v131
    %133 = vmatmul.f32.gmra.mxu0 %v106
    %v134 = vpop.f32.mrf.mxu0
    %v135 = vadd.f32 0.0, %v134
    %136 = vmatmul.f32.gmra.mxu0 %v109
    %v137 = vpop.f32.mrf.mxu0
    %v138 = vadd.f32 0.0, %v137
    %139 = vmatmul.f32.gmra.mxu0 %v112
    %v140 = vpop.f32.mrf.mxu0
    %v141 = vadd.f32 0.0, %v140
    %142 = vdwg.mxu0
    %143 = vmatpush.msra.mxu0 0.0
    %144 = vmatpush.msra.mxu0 0.0
    %145 = vmatpush.msra.mxu0 0.0
    %146 = vmatpush.msra.mxu0 0.0
    %147 = vmatpush.msra.mxu0 0.0
    %148 = vmatpush.msra.mxu0 0.0
    %149 = vmatpush.msra.mxu0 0.0
    %150 = vmatpush.msra.mxu0 0.0
    %151 = vmatpush.msra.mxu0 %v100
    %152 = vmatpush.msra.mxu0 %v98
    %153 = vmatpush.msra.mxu0 %v96
    %154 = vmatpush.msra.mxu0 %v94
    %155 = vmatpush.msra.mxu0 %v92
    %156 = vmatpush.msra.mxu0 %v90
    %157 = vmatpush.msra.mxu0 %v88
    %158 = vmatpush.msra.mxu0 %v86
    %159 = vmatmul.f32.gmra.mxu0 %v103
    %v160 = vpop.f32.mrf.mxu0
    %v161 = vadd.f32 0.0, %v160
    %162 = vmatmul.f32.gmra.mxu0 %v106
    %v163 = vpop.f32.mrf.mxu0
    %v164 = vadd.f32 0.0, %v163
    %165 = vmatmul.f32.gmra.mxu0 %v109
    %v166 = vpop.f32.mrf.mxu0
    %v167 = vadd.f32 0.0, %v166
    %168 = vmatmul.f32.gmra.mxu0 %v112
    %v169 = vpop.f32.mrf.mxu0
    %v170 = vadd.f32 0.0, %v169
    %171 = vdwg.mxu0
    %v172 = vadd.f32 %v73, %v132
    %v173 = vadd.f32 %v74, %v161
    %v174 = vadd.f32 %v75, %v135
    %v175 = vadd.f32 %v76, %v164
    %v176 = vadd.f32 %v77, %v138
    %v177 = vadd.f32 %v78, %v167
    %v178 = vadd.f32 %v79, %v141
    %v179 = vadd.f32 %v80, %v170
    %180 = vst [vmem:[#allocation2] sm:$0xff] %v172
    %181 = vst.msk [vmem:[#allocation2 + $0x8] sm:$0xff] %vm101, %v173
    %182 = vst [vmem:[#allocation2 + $0x10] sm:$0xff] %v174
    %183 = vst.msk [vmem:[#allocation2 + $0x18] sm:$0xff] %vm101, %v175
    %184 = vst [vmem:[#allocation2 + $0x20] sm:$0xff] %v176
    %185 = vst.msk [vmem:[#allocation2 + $0x28] sm:$0xff] %vm101, %v177
    %186 = vst [vmem:[#allocation2 + $0x30] sm:$0xff] %v178
    %187 = vst.msk [vmem:[#allocation2 + $0x38] sm:$0xff] %vm101, %v179
    // Predicated region
    $region30: #{tpu_custom_call.1} parent=1 // pred_check
      %p188 = pneg %p60
    $region31: #{tpu_custom_call.1} parent=1 // pred_check_branch
      %190 = sbr.rel (%p188) target = $region33
    $region32: #{tpu_custom_call.1} parent=1 // pred_region
      %v191 = vld [vmem:[#allocation2] sm:$0xff]
      %v192 = vld [vmem:[#allocation2 + $0x8] sm:$0xff]
      %v193 = vld [vmem:[#allocation2 + $0x10] sm:$0xff]
      %v194 = vld [vmem:[#allocation2 + $0x18] sm:$0xff]
      %v195 = vld [vmem:[#allocation2 + $0x20] sm:$0xff]
      %v196 = vld [vmem:[#allocation2 + $0x28] sm:$0xff]
      %v197 = vld [vmem:[#allocation2 + $0x30] sm:$0xff]
      %v198 = vld [vmem:[#allocation2 + $0x38] sm:$0xff]
      %v199 = vld [vmem:[#allocation8] sm:$0x3]
      %v201 = vperm.slane %v199, 0
      %v202 = vperm.slane %v199, 1
      %v205 = vadd.f32 %v191, %v201
      %v206 = vadd.f32 %v192, %v202
      %v207 = vadd.f32 %v193, %v201
      %v208 = vadd.f32 %v194, %v202
      %v209 = vadd.f32 %v195, %v201
      %v210 = vadd.f32 %v196, %v202
      %v211 = vadd.f32 %v197, %v201
      %v212 = vadd.f32 %v198, %v202
      %213 = vst [vmem:[#allocation9] sm:$0xff] %v205
      %214 = vst.msk [vmem:[#allocation9 + $0x8] sm:$0xff] %vm101, %v206
      %215 = vst [vmem:[#allocation9 + $0x10] sm:$0xff] %v207
      %216 = vst.msk [vmem:[#allocation9 + $0x18] sm:$0xff] %vm101, %v208
      %217 = vst [vmem:[#allocation9 + $0x20] sm:$0xff] %v209
      %218 = vst.msk [vmem:[#allocation9 + $0x28] sm:$0xff] %vm101, %v210
      %219 = vst [vmem:[#allocation9 + $0x30] sm:$0xff] %v211
      %220 = vst.msk [vmem:[#allocation9 + $0x38] sm:$0xff] %vm101, %v212
    $region33: #{tpu_custom_call.1} parent=1 // pred_fallthru
      _
    // Predicated region
    $region34: #{tpu_custom_call.1} parent=1 // pred_check
      _
    $region35: #{tpu_custom_call.1} parent=1 // pred_check_branch
      %222 = sbr.rel (0) target = $region37
    $region36: #{tpu_custom_call.1} parent=1 // pred_region
      %224 = vsyncadd [#allocation5], 0
      %s225 = sshll.u32 [#allocation9], 4
      %s226 = int_to_ptr.vmem [resolvable:$true] %s225
      %s227 = sshll.u32 %s3, 4
      %s228 = int_to_ptr.hbm [resolvable:$true] %s227
      %233 = dma.vmem_to_hbm [thread:$0]  %s226, 1024, %s228, [#allocation5], 256, 256, 16
    $region37: #{tpu_custom_call.1} parent=1 // pred_fallthru
      _
    // Predicated region
    $region38: #{tpu_custom_call.1} parent=1 // pred_check
      _
    $region39: #{tpu_custom_call.1} parent=1 // pred_check_branch
      %235 = sbr.rel (0) target = $region41
    $region40: #{tpu_custom_call.1} parent=1 // pred_region
      %237 = dma.done [#allocation5], 1024
    $region41: #{tpu_custom_call.1} parent=1 // pred_fallthru
      _
    %238 = vsyncpa [#allocation4], 1
    %239 = vsyncpa [#allocation7], 1
    %240 = vsyncpa [#allocation5], 1

</llo_original>
